<compile_context>
chip_gen: v7x
topology: tpu7x:2x2x1
jax: 0.10.0
libtpu: 0.0.40
codegen_flags: <defaults>
</compile_context>

<pallas_src>
import jax
import jax.numpy as jnp
from jax.experimental import pallas as pl
from jax.experimental.pallas import tpu as pltpu

_LN2 = 0.6931471805599453
_BIG = 1e19  # above this, x*x would overflow f32; switch to log(2|x|) form


def _asinh_kernel(x_ref, o_ref):
    # Compute in f32 regardless of input dtype (bf16-safe on v5e, better
    # accuracy everywhere, no extra HBM traffic), cast back on store.
    x = x_ref[...].astype(jnp.float32)
    ax = jnp.abs(x)
    x2 = ax * ax
    root = jnp.sqrt(x2 + 1.0)                      # EUP transcendental #1
    big = ax > jnp.float32(_BIG)
    # Divide-free small-branch argument; large branch folds into the same
    # log1p: log1p(ax - 1) == log(ax) for ax >> 1, then add ln(2) afterwards.
    # (Unselected small branch gives inf, never NaN, so `where` is safe.)
    arg = jnp.where(big, ax - 1.0, ax + (root - 1.0))
    mag = jnp.log1p(arg)                            # EUP transcendental #2
    mag = mag + jnp.where(big, jnp.float32(_LN2), jnp.float32(0.0))
    o_ref[...] = jnp.copysign(mag, x).astype(o_ref.dtype)


def asinh_pallas(x: jax.Array) -> jax.Array:
    orig_shape = x.shape
    orig_dtype = x.dtype
    n = x.size
    if n == 0:
        return x

    x_flat = jnp.ravel(x)

    # Widest lane-dense width (multiple of 128) dividing n; only pad when n is
    # not a multiple of 128 at all (rare; 1D ragged blocks have layout risk on
    # TPU, so we keep the proven 2D path and accept the extra copy there).
    lane = 128
    for cand in (2048, 1024, 512, 256, 128):
        if n % cand == 0:
            lane = cand
            break
    if n % lane != 0:
        n_pad = pl.cdiv(n, lane) * lane
        x_flat = jnp.pad(x_flat, (0, n_pad - n))
    else:
        n_pad = n

    rows = n_pad // lane
    x2d = x_flat.reshape(rows, lane)

    # ~2 MiB per block (at the I/O dtype): with double-buffered input + output
    # that is ~8 MiB of VMEM, well under v5e's 16 MiB default scoped limit.
    itemsize = jnp.dtype(orig_dtype).itemsize
    target_block_bytes = 2 << 20
    max_block_rows = max(8, ((target_block_bytes // itemsize) // lane) // 8 * 8)

    if rows > 64:
        # Aim for >= ~8 grid steps so v7x's second TensorCore gets work and
        # the BlockSpec pipeline overlaps DMA with compute on all chips.
        eighth = -(-rows // 8)                # cdiv(rows, 8)
        eighth = max(8, -(-eighth // 8) * 8)  # round up to a multiple of 8
        block_rows = min(max_block_rows, eighth)
    else:
        block_rows = rows                     # tiny tensor: single block
    grid = (pl.cdiv(rows, block_rows),)
    # Ragged last block (rows % block_rows != 0) is handled by Pallas: OOB
    # reads are garbage (harmless for this elementwise op), OOB writes masked.

    out2d = pl.pallas_call(
        _asinh_kernel,
        out_shape=jax.ShapeDtypeStruct((rows, lane), orig_dtype),
        grid=grid,
        in_specs=[pl.BlockSpec((block_rows, lane), lambda i: (i, 0))],
        out_specs=pl.BlockSpec((block_rows, lane), lambda i: (i, 0)),
        compiler_params=pltpu.CompilerParams(
            dimension_semantics=("parallel",),
            vmem_limit_bytes=32 * 1024 * 1024,
        ),
    )(x2d)

    out_flat = out2d.reshape(-1)
    if n_pad != n:
        out_flat = out_flat[:n]
    return out_flat.reshape(orig_shape)


if __name__ == "__main__":
    key = jax.random.PRNGKey(0)
    # Small NCHW tensor consistent with the module's generic tensor input.
    x = jax.random.normal(key, (2, 4, 16, 16), dtype=jnp.float32)

    y = asinh_pallas(x)
    y = jax.block_until_ready(y)

    y_ref = jnp.arcsinh(x)
    assert y.shape == x.shape and y.dtype == x.dtype
    assert jnp.allclose(y, y_ref, atol=1e-6, rtol=1e-6)

    # Extreme / sign-symmetric values: exercises both formulation branches.
    x_ext = jnp.array(
        [[-3.0e20, -1.0e8, -5.0, -1.0, -0.5, 0.0, 0.5, 1.0],
         [5.0, 1.0e8, 3.0e20, -2.0, 2.0, -100.0, 100.0, 7.5]],
        dtype=jnp.float32,
    )
    y_ext = jax.block_until_ready(asinh_pallas(x_ext))
    y_ext_ref = jnp.arcsinh(x_ext)
    assert jnp.allclose(y_ext, y_ext_ref, atol=1e-5, rtol=1e-5)

    # Larger multi-step case to exercise the pipelined / multi-core grid path.
    x_big = jax.random.normal(jax.random.PRNGKey(1), (8, 64, 256), dtype=jnp.float32)
    y_big = jax.block_until_ready(asinh_pallas(x_big))
    assert jnp.allclose(y_big, jnp.arcsinh(x_big), atol=1e-6, rtol=1e-6)

    print("KERNEL_OK")
</pallas_src>

<mosaic_0001>
module attributes {stable_mosaic.version = 11 : i64} {
  func.func @_asinh_kernel(%arg0: i32, %arg1: memref<1x2048xf32, #tpu.memory_space<vmem>>, %arg2: memref<1x2048xf32, #tpu.memory_space<vmem>>) attributes {dimension_semantics = [#tpu.dimension_semantics<parallel>], iteration_bounds = array<i64: 1>, scalar_prefetch = 0 : i64, scratch_operands = 0 : i64, tpu.core_type = #tpu.core_type<tc>, window_params = [{transform_indices = @transform_0, window_bounds = array<i64: 1, 2048>}, {transform_indices = @transform_1, window_bounds = array<i64: 1, 2048>}]} {
    %c0 = arith.constant 0 : index
    %c0_0 = arith.constant 0 : index
    %0 = vector.load %arg1[%c0, %c0_0] : memref<1x2048xf32, #tpu.memory_space<vmem>>, vector<1x2048xf32>
    %1 = math.absf %0 : vector<1x2048xf32>
    %2 = arith.mulf %1, %1 : vector<1x2048xf32>
    %cst = arith.constant 1.000000e+00 : f32
    %3 = vector.broadcast %cst : f32 to vector<1x2048xf32>
    %4 = arith.addf %2, %3 : vector<1x2048xf32>
    %5 = math.sqrt %4 : vector<1x2048xf32>
    %cst_1 = arith.constant 9.99999998E+18 : f32
    %6 = vector.broadcast %cst_1 : f32 to vector<1x2048xf32>
    %7 = arith.cmpf ogt, %1, %6 : vector<1x2048xf32>
    %cst_2 = arith.constant 1.000000e+00 : f32
    %8 = vector.broadcast %cst_2 : f32 to vector<1x2048xf32>
    %9 = arith.subf %1, %8 : vector<1x2048xf32>
    %cst_3 = arith.constant 1.000000e+00 : f32
    %10 = vector.broadcast %cst_3 : f32 to vector<1x2048xf32>
    %11 = arith.subf %5, %10 : vector<1x2048xf32>
    %12 = arith.addf %1, %11 : vector<1x2048xf32>
    %13 = arith.select %7, %9, %12 : vector<1x2048xi1>, vector<1x2048xf32>
    %14 = math.log1p %13 : vector<1x2048xf32>
    %cst_4 = arith.constant 0.693147182 : f32
    %cst_5 = arith.constant 0.000000e+00 : f32
    %15 = vector.broadcast %cst_4 : f32 to vector<1x2048xf32>
    %16 = vector.broadcast %cst_5 : f32 to vector<1x2048xf32>
    %17 = arith.select %7, %15, %16 : vector<1x2048xi1>, vector<1x2048xf32>
    %18 = arith.addf %14, %17 : vector<1x2048xf32>
    %19 = tpu.bitcast %0 : vector<1x2048xf32> -> vector<1x2048xi32>
    %c31_i32 = arith.constant 31 : i32
    %20 = vector.broadcast %c31_i32 : i32 to vector<1x2048xi32>
    %21 = arith.shrsi %19, %20 : vector<1x2048xi32>
    %c0_i32 = arith.constant 0 : i32
    %22 = vector.broadcast %c0_i32 : i32 to vector<1x2048xi32>
    %23 = arith.cmpi ne, %21, %22 : vector<1x2048xi32>
    %24 = math.absf %18 : vector<1x2048xf32>
    %cst_6 = arith.constant 0.000000e+00 : f32
    %25 = vector.broadcast %cst_6 : f32 to vector<1x2048xf32>
    %26 = arith.subf %25, %24 : vector<1x2048xf32>
    %27 = math.absf %18 : vector<1x2048xf32>
    %28 = arith.select %23, %26, %27 : vector<1x2048xi1>, vector<1x2048xf32>
    %c0_7 = arith.constant 0 : index
    %c0_8 = arith.constant 0 : index
    %29 = vector.load %arg2[%c0_7, %c0_8] : memref<1x2048xf32, #tpu.memory_space<vmem>>, vector<1x2048xf32>
    tpu.vector_store %arg2[%c0_7, %c0_8], %28 {strides = array<i32>} : memref<1x2048xf32, #tpu.memory_space<vmem>>, vector<1x2048xf32>,
    return
  }
  func.func @transform_0(%arg0: i32) -> (i32, i32) {
    %c0_i32 = arith.constant 0 : i32
    %c0_i32_0 = arith.constant 0 : i32
    return %arg0, %c0_i32 : i32, i32
  }
  func.func @transform_1(%arg0: i32) -> (i32, i32) {
    %c0_i32 = arith.constant 0 : i32
    %c0_i32_0 = arith.constant 0 : i32
    return %arg0, %c0_i32 : i32, i32
  }
}

</mosaic_0001>

<llo_original>
// kernel: tpu_custom_call.1
$region0: #{tpu_custom_call.1}
  #allocation0 [shape = 'u32[]', space=smem, size = 0x4, offset = 0x4, fixed_abs, tag = 'smem constant byte address 0x4 - core index']
  #allocation1 [shape = 'u32[144,128]{1,0:T(1,128)}', space=vmem, size = 0x12000, scoped, tag = 'internal scratch']
  %s0 = inlined_call_operand.hbm [shape: f32[1,2048], index: 0, kind: input, shape index: {}]
  %s1 = inlined_call_operand.hbm [shape: f32[1,2048], index: 1, kind: output, shape index: {}]
  %s2 = sld [smem:[#allocation0]]
  $region18: #{tpu_custom_call.1} parent=0
    _
  %s4 = ssub.s32 1, %s2
  %s5 = scalar_select 0, %s4, %s2
  $region1: #{tpu_custom_call.1} parent=0
    #allocation2 [shape = 'u8[8192]{0}', space=vmem, size = 0x2000, scoped, tag = 'input window, operand 0, single buffered']
    #allocation3 [shape = 's32[1]{0}', space=sflag, size = 0x4, scoped, tag = 'scoped memory for tpu_custom_call.1']
    #allocation4 [shape = 's32[1]{0}', space=sflag, size = 0x4, scoped, tag = 'scoped memory for tpu_custom_call.1']
    #allocation5 [shape = 'u8[8192]{0}', space=vmem, size = 0x2000, scoped, tag = 'output window, operand 0, single buffered']
    %6 = vsyncpa [#allocation3], 0
    %7 = vsyncpa [#allocation4], 0
    // Predicated region
    $region2: #{tpu_custom_call.1} parent=1 // pred_check
      _
    $region3: #{tpu_custom_call.1} parent=1 // pred_check_branch
      %9 = sbr.rel (0) target = $region5
    $region4: #{tpu_custom_call.1} parent=1 // pred_region
      %s11 = ssub.s32 256, 256
      %12 = vsyncadd [#allocation3], %s11
      %s14 = sshll.u32 [#allocation2], 4
      %s15 = int_to_ptr.vmem [resolvable:$true] %s14
      %17 = dma.hbm_to_vmem [thread:$0]  %s0, 256, %s15, [#allocation3]
    $region5: #{tpu_custom_call.1} parent=1 // pred_fallthru
      _
    // Predicated region
    $region6: #{tpu_custom_call.1} parent=1 // pred_check
      _
    $region7: #{tpu_custom_call.1} parent=1 // pred_check_branch
      %19 = sbr.rel (0) target = $region9
    $region8: #{tpu_custom_call.1} parent=1 // pred_region
      %20 = dma.done [#allocation3], 256
    $region9: #{tpu_custom_call.1} parent=1 // pred_fallthru
      _
    %v21 = vld [vmem:[#allocation2] sm:$0xff]
    %v22 = vld [vmem:[#allocation2 + $0x8] sm:$0xff]
    %v23 = vand.u32 2147483647, %v21
    %v24 = vand.u32 2147483647, %v22
    %v25 = vmul.f32 %v23, %v23
    %v26 = vmul.f32 %v24, %v24
    %v27 = vadd.f32 %v25, 1.0
    %v28 = vadd.f32 %v26, 1.0
    %v29 = vrsqrt.pop %v27
    %v30 = vmul.f32 %v27, %v29
    %vm31 = vcmp.eq.f32.partialorder %v27, inf
    %v32 = vsel %vm31, %v27, %v30
    %vm33 = vcmp.eq.f32.partialorder %v27, 0.0
    %v34 = vand.u32 %v27, 2147483648
    %v35 = vsel %vm33, %v34, %v32
    %v36 = vrsqrt.pop %v28
    %v37 = vmul.f32 %v28, %v36
    %vm38 = vcmp.eq.f32.partialorder %v28, inf
    %v39 = vsel %vm38, %v28, %v37
    %vm40 = vcmp.eq.f32.partialorder %v28, 0.0
    %v41 = vand.u32 %v28, 2147483648
    %v42 = vsel %vm40, %v41, %v39
    %vm43 = vcmp.gt.f32.partialorder %v23, 1e+19
    %vm44 = vcmp.gt.f32.partialorder %v24, 1e+19
    %v45 = vsub.f32 %v23, 1.0
    %v46 = vsub.f32 %v24, 1.0
    %v47 = vsub.f32 %v35, 1.0
    %v48 = vsub.f32 %v42, 1.0
    %v49 = vadd.f32 %v23, %v47
    %v50 = vadd.f32 %v24, %v48
    %v51 = vsel %vm43, %v45, %v49
    %v52 = vsel %vm44, %v46, %v50
    %v53 = vadd.f32 %v51, 1.0
    %v54 = vlog2.pop %v53
    %v55 = vmul.f32 %v54, 0.6931472
    %v56 = vmul.f32 -0.5, %v51
    %v57 = vadd.f32 %v56, 1.0
    %v58 = vmul.f32 %v57, %v51
    %v59 = vand.u32 2147483647, %v51
    %vm60 = vcmp.lt.f32.partialorder %v59, 0.0004427343
    %v61 = vsel %vm60, %v58, %v55
    %v62 = vadd.f32 %v52, 1.0
    %v63 = vlog2.pop %v62
    %v64 = vmul.f32 %v63, 0.6931472
    %v65 = vmul.f32 -0.5, %v52
    %v66 = vadd.f32 %v65, 1.0
    %v67 = vmul.f32 %v66, %v52
    %v68 = vand.u32 2147483647, %v52
    %vm69 = vcmp.lt.f32.partialorder %v68, 0.0004427343
    %v70 = vsel %vm69, %v67, %v64
    %v71 = vsel %vm43, 0.6931472, 0.0
    %v72 = vsel %vm44, 0.6931472, 0.0
    %v73 = vadd.f32 %v61, %v71
    %v74 = vadd.f32 %v70, %v72
    %v77 = vlaneseq
    %v78 = vshrl.u32 %v77, 7
    %v79 = vsub.s32 0, %v78
    %v80 = vrot.slane %v21, %v79
    %v81 = vlaneseq
    %v82 = vshrl.u32 %v81, 7
    %v83 = vsub.s32 1, %v82
    %v84 = vrot.slane %v21, %v83
    %v85 = vlaneseq
    %v86 = vshrl.u32 %v85, 7
    %v87 = vsub.s32 2, %v86
    %v88 = vrot.slane %v21, %v87
    %v89 = vlaneseq
    %v90 = vshrl.u32 %v89, 7
    %v91 = vsub.s32 3, %v90
    %v92 = vrot.slane %v21, %v91
    %v93 = vlaneseq
    %v94 = vshrl.u32 %v93, 7
    %v95 = vsub.s32 4, %v94
    %v96 = vrot.slane %v21, %v95
    %v97 = vlaneseq
    %v98 = vshrl.u32 %v97, 7
    %v99 = vsub.s32 5, %v98
    %v100 = vrot.slane %v21, %v99
    %v101 = vlaneseq
    %v102 = vshrl.u32 %v101, 7
    %v103 = vsub.s32 6, %v102
    %v104 = vrot.slane %v21, %v103
    %v105 = vlaneseq
    %v106 = vshrl.u32 %v105, 7
    %v107 = vsub.s32 7, %v106
    %v108 = vrot.slane %v21, %v107
    %v109 = vlaneseq
    %v110 = vshrl.u32 %v109, 7
    %v111 = vsub.s32 0, %v110
    %v112 = vrot.slane %v22, %v111
    %v113 = vlaneseq
    %v114 = vshrl.u32 %v113, 7
    %v115 = vsub.s32 1, %v114
    %v116 = vrot.slane %v22, %v115
    %v117 = vlaneseq
    %v118 = vshrl.u32 %v117, 7
    %v119 = vsub.s32 2, %v118
    %v120 = vrot.slane %v22, %v119
    %v121 = vlaneseq
    %v122 = vshrl.u32 %v121, 7
    %v123 = vsub.s32 3, %v122
    %v124 = vrot.slane %v22, %v123
    %v125 = vlaneseq
    %v126 = vshrl.u32 %v125, 7
    %v127 = vsub.s32 4, %v126
    %v128 = vrot.slane %v22, %v127
    %v129 = vlaneseq
    %v130 = vshrl.u32 %v129, 7
    %v131 = vsub.s32 5, %v130
    %v132 = vrot.slane %v22, %v131
    %v133 = vlaneseq
    %v134 = vshrl.u32 %v133, 7
    %v135 = vsub.s32 6, %v134
    %v136 = vrot.slane %v22, %v135
    %v137 = vlaneseq
    %v138 = vshrl.u32 %v137, 7
    %v139 = vsub.s32 7, %v138
    %v140 = vrot.slane %v22, %v139
    %v141 = vshra.s32 %v80, 31
    %v142 = vshra.s32 %v84, 31
    %v143 = vshra.s32 %v88, 31
    %v144 = vshra.s32 %v92, 31
    %v145 = vshra.s32 %v96, 31
    %v146 = vshra.s32 %v100, 31
    %v147 = vshra.s32 %v104, 31
    %v148 = vshra.s32 %v108, 31
    %v149 = vshra.s32 %v112, 31
    %v150 = vshra.s32 %v116, 31
    %v151 = vshra.s32 %v120, 31
    %v152 = vshra.s32 %v124, 31
    %v153 = vshra.s32 %v128, 31
    %v154 = vshra.s32 %v132, 31
    %v155 = vshra.s32 %v136, 31
    %v156 = vshra.s32 %v140, 31
    %vm157 = vcmp.ne.s32.totalorder %v141, 0
    %vm158 = vcmp.ne.s32.totalorder %v142, 0
    %vm159 = vcmp.ne.s32.totalorder %v143, 0
    %vm160 = vcmp.ne.s32.totalorder %v144, 0
    %vm161 = vcmp.ne.s32.totalorder %v145, 0
    %vm162 = vcmp.ne.s32.totalorder %v146, 0
    %vm163 = vcmp.ne.s32.totalorder %v147, 0
    %vm164 = vcmp.ne.s32.totalorder %v148, 0
    %vm165 = vcmp.ne.s32.totalorder %v149, 0
    %vm166 = vcmp.ne.s32.totalorder %v150, 0
    %vm167 = vcmp.ne.s32.totalorder %v151, 0
    %vm168 = vcmp.ne.s32.totalorder %v152, 0
    %vm169 = vcmp.ne.s32.totalorder %v153, 0
    %vm170 = vcmp.ne.s32.totalorder %v154, 0
    %vm171 = vcmp.ne.s32.totalorder %v155, 0
    %vm172 = vcmp.ne.s32.totalorder %v156, 0
    %v173 = vand.u32 2147483647, %v73
    %v174 = vand.u32 2147483647, %v74
    %v175 = vsub.f32 0.0, %v173
    %v176 = vsub.f32 0.0, %v174
    %v179 = vlaneseq
    %v180 = vshrl.u32 %v179, 7
    %v181 = vsub.s32 0, %v180
    %v182 = vrot.slane %v175, %v181
    %v183 = vlaneseq
    %v184 = vshrl.u32 %v183, 7
    %v185 = vsub.s32 1, %v184
    %v186 = vrot.slane %v175, %v185
    %v187 = vlaneseq
    %v188 = vshrl.u32 %v187, 7
    %v189 = vsub.s32 2, %v188
    %v190 = vrot.slane %v175, %v189
    %v191 = vlaneseq
    %v192 = vshrl.u32 %v191, 7
    %v193 = vsub.s32 3, %v192
    %v194 = vrot.slane %v175, %v193
    %v195 = vlaneseq
    %v196 = vshrl.u32 %v195, 7
    %v197 = vsub.s32 4, %v196
    %v198 = vrot.slane %v175, %v197
    %v199 = vlaneseq
    %v200 = vshrl.u32 %v199, 7
    %v201 = vsub.s32 5, %v200
    %v202 = vrot.slane %v175, %v201
    %v203 = vlaneseq
    %v204 = vshrl.u32 %v203, 7
    %v205 = vsub.s32 6, %v204
    %v206 = vrot.slane %v175, %v205
    %v207 = vlaneseq
    %v208 = vshrl.u32 %v207, 7
    %v209 = vsub.s32 7, %v208
    %v210 = vrot.slane %v175, %v209
    %v211 = vlaneseq
    %v212 = vshrl.u32 %v211, 7
    %v213 = vsub.s32 0, %v212
    %v214 = vrot.slane %v176, %v213
    %v215 = vlaneseq
    %v216 = vshrl.u32 %v215, 7
    %v217 = vsub.s32 1, %v216
    %v218 = vrot.slane %v176, %v217
    %v219 = vlaneseq
    %v220 = vshrl.u32 %v219, 7
    %v221 = vsub.s32 2, %v220
    %v222 = vrot.slane %v176, %v221
    %v223 = vlaneseq
    %v224 = vshrl.u32 %v223, 7
    %v225 = vsub.s32 3, %v224
    %v226 = vrot.slane %v176, %v225
    %v227 = vlaneseq
    %v228 = vshrl.u32 %v227, 7
    %v229 = vsub.s32 4, %v228
    %v230 = vrot.slane %v176, %v229
    %v231 = vlaneseq
    %v232 = vshrl.u32 %v231, 7
    %v233 = vsub.s32 5, %v232
    %v234 = vrot.slane %v176, %v233
    %v235 = vlaneseq
    %v236 = vshrl.u32 %v235, 7
    %v237 = vsub.s32 6, %v236
    %v238 = vrot.slane %v176, %v237
    %v239 = vlaneseq
    %v240 = vshrl.u32 %v239, 7
    %v241 = vsub.s32 7, %v240
    %v242 = vrot.slane %v176, %v241
    %v261 = vlaneseq
    %v262 = vshrl.u32 %v261, 7
    %v263 = vsub.s32 0, %v262
    %v264 = vrot.slane %v173, %v263
    %v265 = vlaneseq
    %v266 = vshrl.u32 %v265, 7
    %v267 = vsub.s32 1, %v266
    %v268 = vrot.slane %v173, %v267
    %v269 = vlaneseq
    %v270 = vshrl.u32 %v269, 7
    %v271 = vsub.s32 2, %v270
    %v272 = vrot.slane %v173, %v271
    %v273 = vlaneseq
    %v274 = vshrl.u32 %v273, 7
    %v275 = vsub.s32 3, %v274
    %v276 = vrot.slane %v173, %v275
    %v277 = vlaneseq
    %v278 = vshrl.u32 %v277, 7
    %v279 = vsub.s32 4, %v278
    %v280 = vrot.slane %v173, %v279
    %v281 = vlaneseq
    %v282 = vshrl.u32 %v281, 7
    %v283 = vsub.s32 5, %v282
    %v284 = vrot.slane %v173, %v283
    %v285 = vlaneseq
    %v286 = vshrl.u32 %v285, 7
    %v287 = vsub.s32 6, %v286
    %v288 = vrot.slane %v173, %v287
    %v289 = vlaneseq
    %v290 = vshrl.u32 %v289, 7
    %v291 = vsub.s32 7, %v290
    %v292 = vrot.slane %v173, %v291
    %v293 = vlaneseq
    %v294 = vshrl.u32 %v293, 7
    %v295 = vsub.s32 0, %v294
    %v296 = vrot.slane %v174, %v295
    %v297 = vlaneseq
    %v298 = vshrl.u32 %v297, 7
    %v299 = vsub.s32 1, %v298
    %v300 = vrot.slane %v174, %v299
    %v301 = vlaneseq
    %v302 = vshrl.u32 %v301, 7
    %v303 = vsub.s32 2, %v302
    %v304 = vrot.slane %v174, %v303
    %v305 = vlaneseq
    %v306 = vshrl.u32 %v305, 7
    %v307 = vsub.s32 3, %v306
    %v308 = vrot.slane %v174, %v307
    %v309 = vlaneseq
    %v310 = vshrl.u32 %v309, 7
    %v311 = vsub.s32 4, %v310
    %v312 = vrot.slane %v174, %v311
    %v313 = vlaneseq
    %v314 = vshrl.u32 %v313, 7
    %v315 = vsub.s32 5, %v314
    %v316 = vrot.slane %v174, %v315
    %v317 = vlaneseq
    %v318 = vshrl.u32 %v317, 7
    %v319 = vsub.s32 6, %v318
    %v320 = vrot.slane %v174, %v319
    %v321 = vlaneseq
    %v322 = vshrl.u32 %v321, 7
    %v323 = vsub.s32 7, %v322
    %v324 = vrot.slane %v174, %v323
    %v341 = vsel %vm157, %v182, %v264
    %v342 = vsel %vm158, %v186, %v268
    %v343 = vsel %vm159, %v190, %v272
    %v344 = vsel %vm160, %v194, %v276
    %v345 = vsel %vm161, %v198, %v280
    %v346 = vsel %vm162, %v202, %v284
    %v347 = vsel %vm163, %v206, %v288
    %v348 = vsel %vm164, %v210, %v292
    %v349 = vsel %vm165, %v214, %v296
    %v350 = vsel %vm166, %v218, %v300
    %v351 = vsel %vm167, %v222, %v304
    %v352 = vsel %vm168, %v226, %v308
    %v353 = vsel %vm169, %v230, %v312
    %v354 = vsel %vm170, %v234, %v316
    %v355 = vsel %vm171, %v238, %v320
    %v356 = vsel %vm172, %v242, %v324
    %v373 = vcombine.low %v341, %v342
    %v374 = vcombine.low %v343, %v344
    %v375 = vcombine.low %v345, %v346
    %v376 = vcombine.low %v347, %v348
    %v378 = vunpack.c.l.s4 1966171168
    %v379 = vunpack.c.0.s8 %v378
    %v380 = vlaneseq
    %v381 = vshrl.u32 %v380, 7
    %v382 = vsub.s32 %v379, %v381
    %v383 = vrot.slane %v373, %v382
    %v385 = vunpack.c.l.s4 1966171168
    %v386 = vunpack.c.0.s8 %v385
    %v387 = vlaneseq
    %v388 = vshrl.u32 %v387, 7
    %v389 = vsub.s32 %v386, %v388
    %v390 = vrot.slane %v374, %v389
    %v392 = vunpack.c.l.s4 1966171168
    %v393 = vunpack.c.0.s8 %v392
    %v394 = vlaneseq
    %v395 = vshrl.u32 %v394, 7
    %v396 = vsub.s32 %v393, %v395
    %v397 = vrot.slane %v375, %v396
    %v399 = vunpack.c.l.s4 1966171168
    %v400 = vunpack.c.0.s8 %v399
    %v401 = vlaneseq
    %v402 = vshrl.u32 %v401, 7
    %v403 = vsub.s32 %v400, %v402
    %v404 = vrot.slane %v376, %v403
    %v405 = vcombine.low %v383, %v390
    %v406 = vcombine.low %v397, %v404
    %v408 = vunpack.c.l.s4 1966171168
    %v409 = vunpack.c.0.s8 %v408
    %v410 = vlaneseq
    %v411 = vshrl.u32 %v410, 7
    %v412 = vsub.s32 %v409, %v411
    %v413 = vrot.slane %v405, %v412
    %v415 = vunpack.c.l.s4 1966171168
    %v416 = vunpack.c.0.s8 %v415
    %v417 = vlaneseq
    %v418 = vshrl.u32 %v417, 7
    %v419 = vsub.s32 %v416, %v418
    %v420 = vrot.slane %v406, %v419
    %v421 = vcombine.low %v413, %v420
    %v422 = vcombine.low %v349, %v350
    %v423 = vcombine.low %v351, %v352
    %v424 = vcombine.low %v353, %v354
    %v425 = vcombine.low %v355, %v356
    %v427 = vunpack.c.l.s4 1966171168
    %v428 = vunpack.c.0.s8 %v427
    %v429 = vlaneseq
    %v430 = vshrl.u32 %v429, 7
    %v431 = vsub.s32 %v428, %v430
    %v432 = vrot.slane %v422, %v431
    %v434 = vunpack.c.l.s4 1966171168
    %v435 = vunpack.c.0.s8 %v434
    %v436 = vlaneseq
    %v437 = vshrl.u32 %v436, 7
    %v438 = vsub.s32 %v435, %v437
    %v439 = vrot.slane %v423, %v438
    %v441 = vunpack.c.l.s4 1966171168
    %v442 = vunpack.c.0.s8 %v441
    %v443 = vlaneseq
    %v444 = vshrl.u32 %v443, 7
    %v445 = vsub.s32 %v442, %v444
    %v446 = vrot.slane %v424, %v445
    %v448 = vunpack.c.l.s4 1966171168
    %v449 = vunpack.c.0.s8 %v448
    %v450 = vlaneseq
    %v451 = vshrl.u32 %v450, 7
    %v452 = vsub.s32 %v449, %v451
    %v453 = vrot.slane %v425, %v452
    %v454 = vcombine.low %v432, %v439
    %v455 = vcombine.low %v446, %v453
    %v457 = vunpack.c.l.s4 1966171168
    %v458 = vunpack.c.0.s8 %v457
    %v459 = vlaneseq
    %v460 = vshrl.u32 %v459, 7
    %v461 = vsub.s32 %v458, %v460
    %v462 = vrot.slane %v454, %v461
    %v464 = vunpack.c.l.s4 1966171168
    %v465 = vunpack.c.0.s8 %v464
    %v466 = vlaneseq
    %v467 = vshrl.u32 %v466, 7
    %v468 = vsub.s32 %v465, %v467
    %v469 = vrot.slane %v455, %v468
    %v470 = vcombine.low %v462, %v469
    %473 = vst [vmem:[#allocation5] sm:$0xff] %v421
    %474 = vst [vmem:[#allocation5 + $0x8] sm:$0xff] %v470
    // Predicated region
    $region10: #{tpu_custom_call.1} parent=1 // pred_check
      _
    $region11: #{tpu_custom_call.1} parent=1 // pred_check_branch
      %476 = sbr.rel (0) target = $region13
    $region12: #{tpu_custom_call.1} parent=1 // pred_region
      %s478 = ssub.s32 256, 256
      %479 = vsyncadd [#allocation4], %s478
      %s481 = sshll.u32 [#allocation5], 4
      %s482 = int_to_ptr.vmem [resolvable:$true] %s481
      %484 = dma.vmem_to_hbm [thread:$0]  %s482, 256, %s1, [#allocation4]
    $region13: #{tpu_custom_call.1} parent=1 // pred_fallthru
      _
    // Predicated region
    $region14: #{tpu_custom_call.1} parent=1 // pred_check
      _
    $region15: #{tpu_custom_call.1} parent=1 // pred_check_branch
      %486 = sbr.rel (0) target = $region17
    $region16: #{tpu_custom_call.1} parent=1 // pred_region
      %487 = dma.done [#allocation4], 256
    $region17: #{tpu_custom_call.1} parent=1 // pred_fallthru
      _
    %488 = vsyncpa [#allocation3], 1
    %489 = vsyncpa [#allocation4], 1

</llo_original>
